<compile_context>
chip_gen: v5e
topology: v5e:2x2
jax: 0.10.0
libtpu: 0.0.40
codegen_flags: <defaults>
</compile_context>

<pallas_src>
import jax
import jax.numpy as jnp
from jax.experimental import pallas as pl
from jax.experimental.pallas import tpu as pltpu


def _round_up(x, m):
    return ((x + m - 1) // m) * m


def _pick_time_chunk(T, max_chunk=16):
    tc = min(T, max_chunk)
    while T % tc:
        tc -= 1
    return tc


# ----------------------------- fused model kernel ----------------------------
def _fused_rnn_kernel(
    x_ref,      # (Tc, Bp, Dp)  input chunk (only read for layer 0)
    wih0_ref,   # (Dp, Hp)      layer-0 W_ih^T
    wih_ref,    # (1, Hp, Hp)   layer-l W_ih^T (l >= 1; entry 0 is a dummy)
    whh_ref,    # (1, Hp, Hp)   layer-l W_hh^T
    b_ref,      # (1, 1, Hp)    layer-l (b_ih + b_hh)
    wfc_ref,    # (Hp, Op)      FC weight^T
    bfc_ref,    # (1, Op)       FC bias
    out_ref,    # (Bp, Op)      model output (written once, at the last step)
    seq_ref,    # VMEM (T, Bp, Hp)  layer output sequence (next layer's input)
    h_ref,      # VMEM (Bp, Hp)     recurrent hidden state
    gx_ref,     # VMEM (Tc, Bp, Hp) hoisted input projection (+bias) for this chunk
):
    l = pl.program_id(0)
    t = pl.program_id(1)
    nl = pl.num_programs(0)
    nt = pl.num_programs(1)

    tc, bp, hp = gx_ref.shape
    bias = b_ref[0]                        # (1, Hp)

    # h0 = zeros at the start of every layer (matches torch.zeros init).
    @pl.when(t == 0)
    def _():
        h_ref[...] = jnp.zeros_like(h_ref)

    # ---- Hoisted input projection (+ bias): one MXU matmul over the chunk ----
    @pl.when(l == 0)
    def _():
        x = x_ref[...].reshape(tc * bp, x_ref.shape[2])
        gx_ref[...] = (
            jnp.dot(x, wih0_ref[...], preferred_element_type=jnp.float32) + bias
        ).reshape(tc, bp, hp)

    @pl.when(l > 0)
    def _():
        prev = seq_ref[pl.ds(t * tc, tc)].reshape(tc * bp, hp)
        gx_ref[...] = (
            jnp.dot(prev, wih_ref[0], preferred_element_type=jnp.float32) + bias
        ).reshape(tc, bp, hp)

    whh = whh_ref[0]                       # (Hp, Hp) recurrent weight, reused Tc times

    # ---- Serial recurrence over the chunk: h @ W_hh^T + tanh per step ----
    # gx is re-read one step at a time and h is stored per step (it overwrites
    # the previous layer's chunk, which has already been consumed above), which
    # keeps vreg live ranges short.
    h = h_ref[...]
    for i in range(tc):                    # static unroll (Tc <= 16)
        h = jnp.tanh(gx_ref[i] + jnp.dot(h, whh, preferred_element_type=jnp.float32))
        seq_ref[t * tc + i] = h
    h_ref[...] = h

    # ---- Fused FC on the final hidden state of the last layer ----
    @pl.when(jnp.logical_and(l == nl - 1, t == nt - 1))
    def _():
        out_ref[...] = (
            jnp.dot(h, wfc_ref[...], preferred_element_type=jnp.float32)
            + bfc_ref[...]
        ).astype(out_ref.dtype)


# ------------------------------- model wrapper --------------------------------
@jax.jit
def rnn_model_forward(params, x_btd):
    """x_btd: (B, T, input_dim) -> (B, output_dim). Matches RNNModel.forward (eval)."""
    layers = params["layers"]
    L = len(layers)
    B, T, D = x_btd.shape
    H = layers[0]["w_hh"].shape[0]
    O = params["fc_w"].shape[0]

    f32 = jnp.float32
    Bp = _round_up(B, 8)        # sublane-full batch
    Dp = _round_up(D, 128)      # lane-dense feature dims
    Hp = _round_up(H, 128)
    Op = _round_up(O, 128)
    Tc = _pick_time_chunk(T)
    nt = T // Tc

    # (B,T,D) -> (T,Bp,Dp), zero padded (padding + layout in one XLA copy).
    x_tbd = jnp.transpose(x_btd.astype(f32), (1, 0, 2))
    x_p = jnp.zeros((T, Bp, Dp), f32).at[:, :B, :D].set(x_tbd)

    def pad2(w, r, c):
        w = w.astype(f32)
        return jnp.zeros((r, c), f32).at[: w.shape[0], : w.shape[1]].set(w)

    wih0_t = pad2(layers[0]["w_ih"].T, Dp, Hp)                         # (Dp, Hp)
    wih_stack = jnp.stack(                                             # (L, Hp, Hp)
        [jnp.zeros((Hp, Hp), f32)]                                     # entry 0 unused
        + [pad2(layers[l]["w_ih"].T, Hp, Hp) for l in range(1, L)],
        axis=0,
    )
    whh_stack = jnp.stack(
        [pad2(layers[l]["w_hh"].T, Hp, Hp) for l in range(L)], axis=0  # (L, Hp, Hp)
    )
    bias_stack = jnp.stack(                                            # (L, 1, Hp)
        [
            jnp.zeros((1, Hp), f32).at[0, :H].set(
                (layers[l]["b_ih"] + layers[l]["b_hh"]).astype(f32))
            for l in range(L)
        ],
        axis=0,
    )
    wfc_t = pad2(params["fc_w"].T, Hp, Op)                             # (Hp, Op)
    bfc = jnp.zeros((1, Op), f32).at[0, :O].set(params["fc_b"].astype(f32))

    # TODO(synk): seq scratch is (T, Bp, Hp) in VMEM; for very long sequences this
    # must be re-tiled against the per-TC VMEM budget (64 MiB on v7x).
    out_p = pl.pallas_call(
        _fused_rnn_kernel,
        out_shape=jax.ShapeDtypeStruct((Bp, Op), f32),
        grid_spec=pltpu.PrefetchScalarGridSpec(
            num_scalar_prefetch=0,
            grid=(L, nt),
            in_specs=[
                # x: only needed for layer 0; for l > 0 pin to the chunk that is
                # already resident (last chunk) so x is never re-DMA'd from HBM.
                pl.BlockSpec((Tc, Bp, Dp),
                             lambda l, t: (jnp.where(l == 0, t, nt - 1), 0, 0)),
                pl.BlockSpec((Dp, Hp), lambda l, t: (0, 0)),
                pl.BlockSpec((1, Hp, Hp), lambda l, t: (l, 0, 0)),
                pl.BlockSpec((1, Hp, Hp), lambda l, t: (l, 0, 0)),
                pl.BlockSpec((1, 1, Hp), lambda l, t: (l, 0, 0)),
                pl.BlockSpec((Hp, Op), lambda l, t: (0, 0)),
                pl.BlockSpec((1, Op), lambda l, t: (0, 0)),
            ],
            out_specs=pl.BlockSpec((Bp, Op), lambda l, t: (0, 0)),
            scratch_shapes=[
                pltpu.VMEM((T, Bp, Hp), f32),    # layer output sequence
                pltpu.VMEM((Bp, Hp), f32),       # recurrent hidden state
                pltpu.VMEM((Tc, Bp, Hp), f32),   # chunk input projection (+bias)
            ],
        ),
        compiler_params=pltpu.CompilerParams(
            # layer axis and time axis are both sequential (recurrence / data dep).
            dimension_semantics=("arbitrary", "arbitrary"),
        ),
    )(x_p, wih0_t, wih_stack, whh_stack, bias_stack, wfc_t, bfc)

    return out_p[:B, :O]


# ------------------------------ parameter init --------------------------------
def init_params(key, input_dim, hidden_dim, layer_dim, output_dim):
    """Deterministic parameter init (uniform, PyTorch-like scale)."""
    params = {"layers": []}
    bound = 1.0 / jnp.sqrt(hidden_dim)
    for l in range(layer_dim):
        in_dim = input_dim if l == 0 else hidden_dim
        key, k1, k2, k3, k4 = jax.random.split(key, 5)
        params["layers"].append({
            "w_ih": jax.random.uniform(k1, (hidden_dim, in_dim), jnp.float32, -bound, bound),
            "w_hh": jax.random.uniform(k2, (hidden_dim, hidden_dim), jnp.float32, -bound, bound),
            "b_ih": jax.random.uniform(k3, (hidden_dim,), jnp.float32, -bound, bound),
            "b_hh": jax.random.uniform(k4, (hidden_dim,), jnp.float32, -bound, bound),
        })
    key, k1, k2 = jax.random.split(key, 3)
    params["fc_w"] = jax.random.uniform(k1, (output_dim, hidden_dim), jnp.float32, -bound, bound)
    params["fc_b"] = jax.random.uniform(k2, (output_dim,), jnp.float32, -bound, bound)
    return params


# ----------------------------- pure-JAX reference -----------------------------
def reference_forward(params, x_btd):
    B, T, _ = x_btd.shape
    seq = jnp.transpose(x_btd, (1, 0, 2)).astype(jnp.float32)
    for lp in params["layers"]:
        H = lp["w_hh"].shape[0]
        h = jnp.zeros((B, H), jnp.float32)
        outs = []
        for t in range(T):
            h = jnp.tanh(seq[t] @ lp["w_ih"].T + lp["b_ih"] + h @ lp["w_hh"].T + lp["b_hh"])
            outs.append(h)
        seq = jnp.stack(outs, axis=0)
    return seq[-1] @ params["fc_w"].T + params["fc_b"]


if __name__ == "__main__":
    # Small shapes consistent with the module's forward.
    B, T = 2, 8
    input_dim = 16
    hidden_dim = 32
    layer_dim = 2
    output_dim = 4
    dropout_prob = 0.1   # TODO(synk): nn.RNN inter-layer dropout is training-only; eval forward is identity.

    key = jax.random.PRNGKey(0)
    key, xk = jax.random.split(key)
    x = jax.random.normal(xk, (B, T, input_dim), jnp.float32)

    params = init_params(key, input_dim, hidden_dim, layer_dim, output_dim)

    out = rnn_model_forward(params, x)
    out = jax.block_until_ready(out)

    ref = reference_forward(params, x)
    assert out.shape == (B, output_dim), out.shape
    assert jnp.allclose(out, ref, atol=1e-4, rtol=1e-4), (out, ref)

    print("KERNEL_OK")
</pallas_src>

<mosaic_0001>
module attributes {stable_mosaic.version = 11 : i64} {
  func.func @_fused_rnn_kernel(%arg0: i32, %arg1: i32, %arg2: memref<8x8x128xf32, #tpu.memory_space<vmem>>, %arg3: memref<128x128xf32, #tpu.memory_space<vmem>>, %arg4: memref<1x128x128xf32, #tpu.memory_space<vmem>>, %arg5: memref<1x128x128xf32, #tpu.memory_space<vmem>>, %arg6: memref<1x1x128xf32, #tpu.memory_space<vmem>>, %arg7: memref<128x128xf32, #tpu.memory_space<vmem>>, %arg8: memref<1x128xf32, #tpu.memory_space<vmem>>, %arg9: memref<8x128xf32, #tpu.memory_space<vmem>>, %arg10: memref<8x8x128xf32, #tpu.memory_space<vmem>>, %arg11: memref<8x128xf32, #tpu.memory_space<vmem>>, %arg12: memref<8x8x128xf32, #tpu.memory_space<vmem>>) attributes {dimension_semantics = [#tpu.dimension_semantics<arbitrary>, #tpu.dimension_semantics<arbitrary>], iteration_bounds = array<i64: 2, 1>, scalar_prefetch = 0 : i64, scratch_operands = 3 : i64, tpu.core_type = #tpu.core_type<tc>, window_params = [{transform_indices = @transform_0, window_bounds = array<i64: 8, 8, 128>}, {pipeline_mode = #tpu.pipeline_mode<synchronous>, transform_indices = @transform_1, window_bounds = array<i64: 128, 128>}, {transform_indices = @transform_2, window_bounds = array<i64: 1, 128, 128>}, {transform_indices = @transform_3, window_bounds = array<i64: 1, 128, 128>}, {transform_indices = @transform_4, window_bounds = array<i64: 1, 1, 128>}, {pipeline_mode = #tpu.pipeline_mode<synchronous>, transform_indices = @transform_5, window_bounds = array<i64: 128, 128>}, {pipeline_mode = #tpu.pipeline_mode<synchronous>, transform_indices = @transform_6, window_bounds = array<i64: 1, 128>}, {pipeline_mode = #tpu.pipeline_mode<synchronous>, transform_indices = @transform_7, window_bounds = array<i64: 8, 128>}]} {
    %c0 = arith.constant 0 : index
    %c0_0 = arith.constant 0 : index
    %c0_1 = arith.constant 0 : index
    %0 = vector.load %arg6[%c0, %c0_0, %c0_1] : memref<1x1x128xf32, #tpu.memory_space<vmem>>, vector<1x1x128xf32>
    %1 = vector.shape_cast %0 : vector<1x1x128xf32> to vector<1x128xf32>
    %c0_i32 = arith.constant 0 : i32
    %2 = arith.cmpi eq, %arg1, %c0_i32 : i32
    %3 = arith.extui %2 : i1 to i32
    %c0_i32_2 = arith.constant 0 : i32
    %4 = arith.cmpi ne, %3, %c0_i32_2 : i32
    scf.if %4 {
      %cst_65 = arith.constant 0.000000e+00 : f32
      %108 = vector.broadcast %cst_65 : f32 to vector<8x128xf32>
      %c0_66 = arith.constant 0 : index
      %c0_67 = arith.constant 0 : index
      %109 = vector.load %arg11[%c0_66, %c0_67] : memref<8x128xf32, #tpu.memory_space<vmem>>, vector<8x128xf32>
      tpu.vector_store %arg11[%c0_66, %c0_67], %108 {strides = array<i32>} : memref<8x128xf32, #tpu.memory_space<vmem>>, vector<8x128xf32>,
    } else {
    }
    %c0_i32_3 = arith.constant 0 : i32
    %5 = arith.cmpi eq, %arg0, %c0_i32_3 : i32
    %6 = arith.extui %5 : i1 to i32
    %c0_i32_4 = arith.constant 0 : i32
    %7 = arith.cmpi ne, %6, %c0_i32_4 : i32
    scf.if %7 {
      %c0_65 = arith.constant 0 : index
      %c0_66 = arith.constant 0 : index
      %c0_67 = arith.constant 0 : index
      %108 = vector.load %arg2[%c0_65, %c0_66, %c0_67] : memref<8x8x128xf32, #tpu.memory_space<vmem>>, vector<8x8x128xf32>
      %109 = vector.shape_cast %108 : vector<8x8x128xf32> to vector<64x128xf32>
      %c0_68 = arith.constant 0 : index
      %c0_69 = arith.constant 0 : index
      %110 = vector.load %arg3[%c0_68, %c0_69] : memref<128x128xf32, #tpu.memory_space<vmem>>, vector<128x128xf32>
      %cst_70 = arith.constant dense<0.000000e+00> : vector<64x128xf32>
      %111 = tpu.matmul %109, %110, %cst_70 {dimension_numbers = #tpu.dot_dimension_numbers<[1], [0], [0], [1], [0, 0, 1, 1], [], []>} : vector<64x128xf32>, vector<128x128xf32>, vector<64x128xf32> -> vector<64x128xf32>
      %112 = vector.broadcast %1 : vector<1x128xf32> to vector<64x128xf32>
      %113 = arith.addf %111, %112 : vector<64x128xf32>
      %114 = vector.shape_cast %113 : vector<64x128xf32> to vector<8x8x128xf32>
      %c0_71 = arith.constant 0 : index
      %c0_72 = arith.constant 0 : index
      %c0_73 = arith.constant 0 : index
      %115 = vector.load %arg12[%c0_71, %c0_72, %c0_73] : memref<8x8x128xf32, #tpu.memory_space<vmem>>, vector<8x8x128xf32>
      tpu.vector_store %arg12[%c0_71, %c0_72, %c0_73], %114 {strides = array<i32>} : memref<8x8x128xf32, #tpu.memory_space<vmem>>, vector<8x8x128xf32>,
    } else {
    }
    %c0_i32_5 = arith.constant 0 : i32
    %8 = arith.cmpi sgt, %arg0, %c0_i32_5 : i32
    %9 = arith.extui %8 : i1 to i32
    %c0_i32_6 = arith.constant 0 : i32
    %10 = arith.cmpi ne, %9, %c0_i32_6 : i32
    scf.if %10 {
      %c8_i32_65 = arith.constant 8 : i32
      %108 = arith.muli %arg1, %c8_i32_65 : i32
      %109 = arith.index_cast %108 : i32 to index
      %c0_66 = arith.constant 0 : index
      %c0_67 = arith.constant 0 : index
      %110 = vector.load %arg10[%109, %c0_66, %c0_67] : memref<8x8x128xf32, #tpu.memory_space<vmem>>, vector<8x8x128xf32>
      %111 = vector.shape_cast %110 : vector<8x8x128xf32> to vector<64x128xf32>
      %c0_68 = arith.constant 0 : index
      %c0_69 = arith.constant 0 : index
      %c0_70 = arith.constant 0 : index
      %112 = vector.load %arg4[%c0_68, %c0_69, %c0_70] : memref<1x128x128xf32, #tpu.memory_space<vmem>>, vector<1x128x128xf32>
      %113 = vector.shape_cast %112 : vector<1x128x128xf32> to vector<128x128xf32>
      %cst_71 = arith.constant dense<0.000000e+00> : vector<64x128xf32>
      %114 = tpu.matmul %111, %113, %cst_71 {dimension_numbers = #tpu.dot_dimension_numbers<[1], [0], [0], [1], [0, 0, 1, 1], [], []>} : vector<64x128xf32>, vector<128x128xf32>, vector<64x128xf32> -> vector<64x128xf32>
      %115 = vector.broadcast %1 : vector<1x128xf32> to vector<64x128xf32>
      %116 = arith.addf %114, %115 : vector<64x128xf32>
      %117 = vector.shape_cast %116 : vector<64x128xf32> to vector<8x8x128xf32>
      %c0_72 = arith.constant 0 : index
      %c0_73 = arith.constant 0 : index
      %c0_74 = arith.constant 0 : index
      %118 = vector.load %arg12[%c0_72, %c0_73, %c0_74] : memref<8x8x128xf32, #tpu.memory_space<vmem>>, vector<8x8x128xf32>
      tpu.vector_store %arg12[%c0_72, %c0_73, %c0_74], %117 {strides = array<i32>} : memref<8x8x128xf32, #tpu.memory_space<vmem>>, vector<8x8x128xf32>,
    } else {
    }
    %c0_7 = arith.constant 0 : index
    %c0_8 = arith.constant 0 : index
    %c0_9 = arith.constant 0 : index
    %11 = vector.load %arg5[%c0_7, %c0_8, %c0_9] : memref<1x128x128xf32, #tpu.memory_space<vmem>>, vector<1x128x128xf32>
    %12 = vector.shape_cast %11 : vector<1x128x128xf32> to vector<128x128xf32>
    %c0_10 = arith.constant 0 : index
    %c0_11 = arith.constant 0 : index
    %13 = vector.load %arg11[%c0_10, %c0_11] : memref<8x128xf32, #tpu.memory_space<vmem>>, vector<8x128xf32>
    %c0_12 = arith.constant 0 : index
    %c0_13 = arith.constant 0 : index
    %c0_14 = arith.constant 0 : index
    %14 = vector.load %arg12[%c0_12, %c0_13, %c0_14] : memref<8x8x128xf32, #tpu.memory_space<vmem>>, vector<1x8x128xf32>
    %15 = vector.shape_cast %14 : vector<1x8x128xf32> to vector<8x128xf32>
    %cst = arith.constant dense<0.000000e+00> : vector<8x128xf32>
    %16 = tpu.matmul %13, %12, %cst {dimension_numbers = #tpu.dot_dimension_numbers<[1], [0], [0], [1], [0, 0, 1, 1], [], []>} : vector<8x128xf32>, vector<128x128xf32>, vector<8x128xf32> -> vector<8x128xf32>
    %17 = arith.addf %15, %16 : vector<8x128xf32>
    %18 = math.tanh %17 : vector<8x128xf32>
    %c8_i32 = arith.constant 8 : i32
    %19 = arith.muli %arg1, %c8_i32 : i32
    %c0_i32_15 = arith.constant 0 : i32
    %20 = arith.addi %19, %c0_i32_15 : i32
    %21 = arith.index_cast %20 : i32 to index
    %c0_16 = arith.constant 0 : index
    %c0_17 = arith.constant 0 : index
    %22 = vector.load %arg10[%21, %c0_16, %c0_17] : memref<8x8x128xf32, #tpu.memory_space<vmem>>, vector<1x8x128xf32>
    %23 = vector.shape_cast %22 : vector<1x8x128xf32> to vector<8x128xf32>
    %24 = vector.shape_cast %18 : vector<8x128xf32> to vector<1x8x128xf32>
    tpu.vector_store %arg10[%21, %c0_16, %c0_17], %24 {strides = array<i32>} : memref<8x8x128xf32, #tpu.memory_space<vmem>>, vector<1x8x128xf32>,
    %c1 = arith.constant 1 : index
    %c0_18 = arith.constant 0 : index
    %c0_19 = arith.constant 0 : index
    %25 = vector.load %arg12[%c1, %c0_18, %c0_19] : memref<8x8x128xf32, #tpu.memory_space<vmem>>, vector<1x8x128xf32>
    %26 = vector.shape_cast %25 : vector<1x8x128xf32> to vector<8x128xf32>
    %cst_20 = arith.constant dense<0.000000e+00> : vector<8x128xf32>
    %27 = tpu.matmul %18, %12, %cst_20 {dimension_numbers = #tpu.dot_dimension_numbers<[1], [0], [0], [1], [0, 0, 1, 1], [], []>} : vector<8x128xf32>, vector<128x128xf32>, vector<8x128xf32> -> vector<8x128xf32>
    %28 = arith.addf %26, %27 : vector<8x128xf32>
    %29 = math.tanh %28 : vector<8x128xf32>
    %c8_i32_21 = arith.constant 8 : i32
    %30 = arith.muli %arg1, %c8_i32_21 : i32
    %c1_i32 = arith.constant 1 : i32
    %31 = arith.addi %30, %c1_i32 : i32
    %32 = arith.index_cast %31 : i32 to index
    %c0_22 = arith.constant 0 : index
    %c0_23 = arith.constant 0 : index
    %33 = vector.load %arg10[%32, %c0_22, %c0_23] : memref<8x8x128xf32, #tpu.memory_space<vmem>>, vector<1x8x128xf32>
    %34 = vector.shape_cast %33 : vector<1x8x128xf32> to vector<8x128xf32>
    %35 = vector.shape_cast %29 : vector<8x128xf32> to vector<1x8x128xf32>
    tpu.vector_store %arg10[%32, %c0_22, %c0_23], %35 {strides = array<i32>} : memref<8x8x128xf32, #tpu.memory_space<vmem>>, vector<1x8x128xf32>,
    %c2 = arith.constant 2 : index
    %c0_24 = arith.constant 0 : index
    %c0_25 = arith.constant 0 : index
    %36 = vector.load %arg12[%c2, %c0_24, %c0_25] : memref<8x8x128xf32, #tpu.memory_space<vmem>>, vector<1x8x128xf32>
    %37 = vector.shape_cast %36 : vector<1x8x128xf32> to vector<8x128xf32>
    %cst_26 = arith.constant dense<0.000000e+00> : vector<8x128xf32>
    %38 = tpu.matmul %29, %12, %cst_26 {dimension_numbers = #tpu.dot_dimension_numbers<[1], [0], [0], [1], [0, 0, 1, 1], [], []>} : vector<8x128xf32>, vector<128x128xf32>, vector<8x128xf32> -> vector<8x128xf32>
    %39 = arith.addf %37, %38 : vector<8x128xf32>
    %40 = math.tanh %39 : vector<8x128xf32>
    %c8_i32_27 = arith.constant 8 : i32
    %41 = arith.muli %arg1, %c8_i32_27 : i32
    %c2_i32 = arith.constant 2 : i32
    %42 = arith.addi %41, %c2_i32 : i32
    %43 = arith.index_cast %42 : i32 to index
    %c0_28 = arith.constant 0 : index
    %c0_29 = arith.constant 0 : index
    %44 = vector.load %arg10[%43, %c0_28, %c0_29] : memref<8x8x128xf32, #tpu.memory_space<vmem>>, vector<1x8x128xf32>
    %45 = vector.shape_cast %44 : vector<1x8x128xf32> to vector<8x128xf32>
    %46 = vector.shape_cast %40 : vector<8x128xf32> to vector<1x8x128xf32>
    tpu.vector_store %arg10[%43, %c0_28, %c0_29], %46 {strides = array<i32>} : memref<8x8x128xf32, #tpu.memory_space<vmem>>, vector<1x8x128xf32>,
    %c3 = arith.constant 3 : index
    %c0_30 = arith.constant 0 : index
    %c0_31 = arith.constant 0 : index
    %47 = vector.load %arg12[%c3, %c0_30, %c0_31] : memref<8x8x128xf32, #tpu.memory_space<vmem>>, vector<1x8x128xf32>
    %48 = vector.shape_cast %47 : vector<1x8x128xf32> to vector<8x128xf32>
    %cst_32 = arith.constant dense<0.000000e+00> : vector<8x128xf32>
    %49 = tpu.matmul %40, %12, %cst_32 {dimension_numbers = #tpu.dot_dimension_numbers<[1], [0], [0], [1], [0, 0, 1, 1], [], []>} : vector<8x128xf32>, vector<128x128xf32>, vector<8x128xf32> -> vector<8x128xf32>
    %50 = arith.addf %48, %49 : vector<8x128xf32>
    %51 = math.tanh %50 : vector<8x128xf32>
    %c8_i32_33 = arith.constant 8 : i32
    %52 = arith.muli %arg1, %c8_i32_33 : i32
    %c3_i32 = arith.constant 3 : i32
    %53 = arith.addi %52, %c3_i32 : i32
    %54 = arith.index_cast %53 : i32 to index
    %c0_34 = arith.constant 0 : index
    %c0_35 = arith.constant 0 : index
    %55 = vector.load %arg10[%54, %c0_34, %c0_35] : memref<8x8x128xf32, #tpu.memory_space<vmem>>, vector<1x8x128xf32>
    %56 = vector.shape_cast %55 : vector<1x8x128xf32> to vector<8x128xf32>
    %57 = vector.shape_cast %51 : vector<8x128xf32> to vector<1x8x128xf32>
    tpu.vector_store %arg10[%54, %c0_34, %c0_35], %57 {strides = array<i32>} : memref<8x8x128xf32, #tpu.memory_space<vmem>>, vector<1x8x128xf32>,
    %c4 = arith.constant 4 : index
    %c0_36 = arith.constant 0 : index
    %c0_37 = arith.constant 0 : index
    %58 = vector.load %arg12[%c4, %c0_36, %c0_37] : memref<8x8x128xf32, #tpu.memory_space<vmem>>, vector<1x8x128xf32>
    %59 = vector.shape_cast %58 : vector<1x8x128xf32> to vector<8x128xf32>
    %cst_38 = arith.constant dense<0.000000e+00> : vector<8x128xf32>
    %60 = tpu.matmul %51, %12, %cst_38 {dimension_numbers = #tpu.dot_dimension_numbers<[1], [0], [0], [1], [0, 0, 1, 1], [], []>} : vector<8x128xf32>, vector<128x128xf32>, vector<8x128xf32> -> vector<8x128xf32>
    %61 = arith.addf %59, %60 : vector<8x128xf32>
    %62 = math.tanh %61 : vector<8x128xf32>
    %c8_i32_39 = arith.constant 8 : i32
    %63 = arith.muli %arg1, %c8_i32_39 : i32
    %c4_i32 = arith.constant 4 : i32
    %64 = arith.addi %63, %c4_i32 : i32
    %65 = arith.index_cast %64 : i32 to index
    %c0_40 = arith.constant 0 : index
    %c0_41 = arith.constant 0 : index
    %66 = vector.load %arg10[%65, %c0_40, %c0_41] : memref<8x8x128xf32, #tpu.memory_space<vmem>>, vector<1x8x128xf32>
    %67 = vector.shape_cast %66 : vector<1x8x128xf32> to vector<8x128xf32>
    %68 = vector.shape_cast %62 : vector<8x128xf32> to vector<1x8x128xf32>
    tpu.vector_store %arg10[%65, %c0_40, %c0_41], %68 {strides = array<i32>} : memref<8x8x128xf32, #tpu.memory_space<vmem>>, vector<1x8x128xf32>,
    %c5 = arith.constant 5 : index
    %c0_42 = arith.constant 0 : index
    %c0_43 = arith.constant 0 : index
    %69 = vector.load %arg12[%c5, %c0_42, %c0_43] : memref<8x8x128xf32, #tpu.memory_space<vmem>>, vector<1x8x128xf32>
    %70 = vector.shape_cast %69 : vector<1x8x128xf32> to vector<8x128xf32>
    %cst_44 = arith.constant dense<0.000000e+00> : vector<8x128xf32>
    %71 = tpu.matmul %62, %12, %cst_44 {dimension_numbers = #tpu.dot_dimension_numbers<[1], [0], [0], [1], [0, 0, 1, 1], [], []>} : vector<8x128xf32>, vector<128x128xf32>, vector<8x128xf32> -> vector<8x128xf32>
    %72 = arith.addf %70, %71 : vector<8x128xf32>
    %73 = math.tanh %72 : vector<8x128xf32>
    %c8_i32_45 = arith.constant 8 : i32
    %74 = arith.muli %arg1, %c8_i32_45 : i32
    %c5_i32 = arith.constant 5 : i32
    %75 = arith.addi %74, %c5_i32 : i32
    %76 = arith.index_cast %75 : i32 to index
    %c0_46 = arith.constant 0 : index
    %c0_47 = arith.constant 0 : index
    %77 = vector.load %arg10[%76, %c0_46, %c0_47] : memref<8x8x128xf32, #tpu.memory_space<vmem>>, vector<1x8x128xf32>
    %78 = vector.shape_cast %77 : vector<1x8x128xf32> to vector<8x128xf32>
    %79 = vector.shape_cast %73 : vector<8x128xf32> to vector<1x8x128xf32>
    tpu.vector_store %arg10[%76, %c0_46, %c0_47], %79 {strides = array<i32>} : memref<8x8x128xf32, #tpu.memory_space<vmem>>, vector<1x8x128xf32>,
    %c6 = arith.constant 6 : index
    %c0_48 = arith.constant 0 : index
    %c0_49 = arith.constant 0 : index
    %80 = vector.load %arg12[%c6, %c0_48, %c0_49] : memref<8x8x128xf32, #tpu.memory_space<vmem>>, vector<1x8x128xf32>
    %81 = vector.shape_cast %80 : vector<1x8x128xf32> to vector<8x128xf32>
    %cst_50 = arith.constant dense<0.000000e+00> : vector<8x128xf32>
    %82 = tpu.matmul %73, %12, %cst_50 {dimension_numbers = #tpu.dot_dimension_numbers<[1], [0], [0], [1], [0, 0, 1, 1], [], []>} : vector<8x128xf32>, vector<128x128xf32>, vector<8x128xf32> -> vector<8x128xf32>
    %83 = arith.addf %81, %82 : vector<8x128xf32>
    %84 = math.tanh %83 : vector<8x128xf32>
    %c8_i32_51 = arith.constant 8 : i32
    %85 = arith.muli %arg1, %c8_i32_51 : i32
    %c6_i32 = arith.constant 6 : i32
    %86 = arith.addi %85, %c6_i32 : i32
    %87 = arith.index_cast %86 : i32 to index
    %c0_52 = arith.constant 0 : index
    %c0_53 = arith.constant 0 : index
    %88 = vector.load %arg10[%87, %c0_52, %c0_53] : memref<8x8x128xf32, #tpu.memory_space<vmem>>, vector<1x8x128xf32>
    %89 = vector.shape_cast %88 : vector<1x8x128xf32> to vector<8x128xf32>
    %90 = vector.shape_cast %84 : vector<8x128xf32> to vector<1x8x128xf32>
    tpu.vector_store %arg10[%87, %c0_52, %c0_53], %90 {strides = array<i32>} : memref<8x8x128xf32, #tpu.memory_space<vmem>>, vector<1x8x128xf32>,
    %c7 = arith.constant 7 : index
    %c0_54 = arith.constant 0 : index
    %c0_55 = arith.constant 0 : index
    %91 = vector.load %arg12[%c7, %c0_54, %c0_55] : memref<8x8x128xf32, #tpu.memory_space<vmem>>, vector<1x8x128xf32>
    %92 = vector.shape_cast %91 : vector<1x8x128xf32> to vector<8x128xf32>
    %cst_56 = arith.constant dense<0.000000e+00> : vector<8x128xf32>
    %93 = tpu.matmul %84, %12, %cst_56 {dimension_numbers = #tpu.dot_dimension_numbers<[1], [0], [0], [1], [0, 0, 1, 1], [], []>} : vector<8x128xf32>, vector<128x128xf32>, vector<8x128xf32> -> vector<8x128xf32>
    %94 = arith.addf %92, %93 : vector<8x128xf32>
    %95 = math.tanh %94 : vector<8x128xf32>
    %c8_i32_57 = arith.constant 8 : i32
    %96 = arith.muli %arg1, %c8_i32_57 : i32
    %c7_i32 = arith.constant 7 : i32
    %97 = arith.addi %96, %c7_i32 : i32
    %98 = arith.index_cast %97 : i32 to index
    %c0_58 = arith.constant 0 : index
    %c0_59 = arith.constant 0 : index
    %99 = vector.load %arg10[%98, %c0_58, %c0_59] : memref<8x8x128xf32, #tpu.memory_space<vmem>>, vector<1x8x128xf32>
    %100 = vector.shape_cast %99 : vector<1x8x128xf32> to vector<8x128xf32>
    %101 = vector.shape_cast %95 : vector<8x128xf32> to vector<1x8x128xf32>
    tpu.vector_store %arg10[%98, %c0_58, %c0_59], %101 {strides = array<i32>} : memref<8x8x128xf32, #tpu.memory_space<vmem>>, vector<1x8x128xf32>,
    %c0_60 = arith.constant 0 : index
    %c0_61 = arith.constant 0 : index
    %102 = vector.load %arg11[%c0_60, %c0_61] : memref<8x128xf32, #tpu.memory_space<vmem>>, vector<8x128xf32>
    tpu.vector_store %arg11[%c0_60, %c0_61], %95 {strides = array<i32>} : memref<8x128xf32, #tpu.memory_space<vmem>>, vector<8x128xf32>,
    %c1_i32_62 = arith.constant 1 : i32
    %103 = arith.cmpi eq, %arg0, %c1_i32_62 : i32
    %c0_i32_63 = arith.constant 0 : i32
    %104 = arith.cmpi eq, %arg1, %c0_i32_63 : i32
    %105 = arith.andi %103, %104 : i1
    %106 = arith.extui %105 : i1 to i32
    %c0_i32_64 = arith.constant 0 : i32
    %107 = arith.cmpi ne, %106, %c0_i32_64 : i32
    scf.if %107 {
      %c0_65 = arith.constant 0 : index
      %c0_66 = arith.constant 0 : index
      %108 = vector.load %arg7[%c0_65, %c0_66] : memref<128x128xf32, #tpu.memory_space<vmem>>, vector<128x128xf32>
      %cst_67 = arith.constant dense<0.000000e+00> : vector<8x128xf32>
      %109 = tpu.matmul %95, %108, %cst_67 {dimension_numbers = #tpu.dot_dimension_numbers<[1], [0], [0], [1], [0, 0, 1, 1], [], []>} : vector<8x128xf32>, vector<128x128xf32>, vector<8x128xf32> -> vector<8x128xf32>
      %c0_68 = arith.constant 0 : index
      %c0_69 = arith.constant 0 : index
      %110 = vector.load %arg8[%c0_68, %c0_69] : memref<1x128xf32, #tpu.memory_space<vmem>>, vector<1x128xf32>
      %111 = vector.broadcast %110 : vector<1x128xf32> to vector<8x128xf32>
      %112 = arith.addf %109, %111 : vector<8x128xf32>
      %c0_70 = arith.constant 0 : index
      %c0_71 = arith.constant 0 : index
      %113 = vector.load %arg9[%c0_70, %c0_71] : memref<8x128xf32, #tpu.memory_space<vmem>>, vector<8x128xf32>
      tpu.vector_store %arg9[%c0_70, %c0_71], %112 {strides = array<i32>} : memref<8x128xf32, #tpu.memory_space<vmem>>, vector<8x128xf32>,
    } else {
    }
    return
  }
  func.func @transform_0(%arg0: i32, %arg1: i32) -> (i32, i32, i32) {
    %c0_i32 = arith.constant 0 : i32
    %0 = arith.cmpi eq, %arg0, %c0_i32 : i32
    %c0_i32_0 = arith.constant 0 : i32
    %1 = arith.select %0, %arg1, %c0_i32_0 : i32
    %c0_i32_1 = arith.constant 0 : i32
    %c0_i32_2 = arith.constant 0 : i32
    %c0_i32_3 = arith.constant 0 : i32
    return %1, %c0_i32_1, %c0_i32_2 : i32, i32, i32
  }
  func.func @transform_1(%arg0: i32, %arg1: i32) -> (i32, i32) {
    %c0_i32 = arith.constant 0 : i32
    %c0_i32_0 = arith.constant 0 : i32
    %c0_i32_1 = arith.constant 0 : i32
    return %c0_i32, %c0_i32_0 : i32, i32
  }
  func.func @transform_2(%arg0: i32, %arg1: i32) -> (i32, i32, i32) {
    %c0_i32 = arith.constant 0 : i32
    %c0_i32_0 = arith.constant 0 : i32
    %c0_i32_1 = arith.constant 0 : i32
    return %arg0, %c0_i32, %c0_i32_0 : i32, i32, i32
  }
  func.func @transform_3(%arg0: i32, %arg1: i32) -> (i32, i32, i32) {
    %c0_i32 = arith.constant 0 : i32
    %c0_i32_0 = arith.constant 0 : i32
    %c0_i32_1 = arith.constant 0 : i32
    return %arg0, %c0_i32, %c0_i32_0 : i32, i32, i32
  }
  func.func @transform_4(%arg0: i32, %arg1: i32) -> (i32, i32, i32) {
    %c0_i32 = arith.constant 0 : i32
    %c0_i32_0 = arith.constant 0 : i32
    %c0_i32_1 = arith.constant 0 : i32
    return %arg0, %c0_i32, %c0_i32_0 : i32, i32, i32
  }
  func.func @transform_5(%arg0: i32, %arg1: i32) -> (i32, i32) {
    %c0_i32 = arith.constant 0 : i32
    %c0_i32_0 = arith.constant 0 : i32
    %c0_i32_1 = arith.constant 0 : i32
    return %c0_i32, %c0_i32_0 : i32, i32
  }
  func.func @transform_6(%arg0: i32, %arg1: i32) -> (i32, i32) {
    %c0_i32 = arith.constant 0 : i32
    %c0_i32_0 = arith.constant 0 : i32
    %c0_i32_1 = arith.constant 0 : i32
    return %c0_i32, %c0_i32_0 : i32, i32
  }
  func.func @transform_7(%arg0: i32, %arg1: i32) -> (i32, i32) {
    %c0_i32 = arith.constant 0 : i32
    %c0_i32_0 = arith.constant 0 : i32
    %c0_i32_1 = arith.constant 0 : i32
    return %c0_i32, %c0_i32_0 : i32, i32
  }
}

</mosaic_0001>

<llo_original>
// kernel: rnn_model_forward.1
$region0: #{rnn_model_forward.1}
  #allocation0 [shape = 'u32[]', space=smem, size = 0x4, offset = 0x4, fixed_abs, tag = 'smem constant byte address 0x4 - core index']
  #allocation1 [shape = 'u32[72,128]{1,0:T(1,128)}', space=vmem, size = 0x9000, scoped, tag = 'internal scratch']
  #allocation2 [shape = 'f32[8,8,128]{2,1,0:T(8,128)}', space=vmem, size = 0x8000, scoped, tag = 'scratch operand']
  #allocation3 [shape = 'f32[8,128]{1,0:T(8,128)}', space=vmem, size = 0x1000, scoped, tag = 'scratch operand']
  #allocation4 [shape = 'f32[8,8,128]{2,1,0:T(8,128)}', space=vmem, size = 0x8000, scoped, tag = 'scratch operand']
  %s0 = inlined_call_operand.vmem [shape: f32[8,8,128], index: 0, kind: input, shape index: {}]
  %s1 = inlined_call_operand.vmem [shape: f32[128,128], index: 1, kind: input, shape index: {}]
  %s2 = inlined_call_operand.vmem [shape: f32[2,128,128], index: 2, kind: input, shape index: {}]
  %s3 = inlined_call_operand.vmem [shape: f32[2,128,128], index: 3, kind: input, shape index: {}]
  %s4 = inlined_call_operand.vmem [shape: f32[2,1,128], index: 4, kind: input, shape index: {}]
  %s5 = inlined_call_operand.vmem [shape: f32[128,128], index: 5, kind: input, shape index: {}]
  %s6 = inlined_call_operand.vmem [shape: f32[1,128], index: 6, kind: input, shape index: {}]
  %s7 = inlined_call_operand.vmem [shape: f32[8,128], index: 7, kind: output, shape index: {}]
  %s8 = sld [smem:[#allocation0]]
  $region77: #{rnn_model_forward.1} parent=0
    _
  %s10 = ssub.s32 1, %s8
  %s11 = scalar_select 0, %s10, %s8
  loop: start=0, step=1, limit=4
  $region2: #{rnn_model_forward.1} parent=0 // loop_pre_header
    _
  $region3: #{rnn_model_forward.1} parent=0 // loop_header
    %s13 = sphi 0, %s17
    %p14 = scmp.ge.s32.totalorder %s13, 4
    %s20 = sphi 0, %s32
    %s21 = sphi 0, %s28
    %s22 = sphi 0, %s20
    %s23 = sphi 0, %s21
    %s24 = sphi 0, %s22
    %s25 = sphi 0, %s23
    %s39 = sphi 0, %s41
    %s42 = sphi 0, %s39
    %s43 = sphi 0, %s42
    %s59 = sphi 0, %s43
    %s63 = sphi 0, %s63
    %s65 = sphi 0, %s63
    %s66 = sphi 0, %s65
    %s80 = sphi 0, %s66
    %s86 = sphi 0, %s88
    %s89 = sphi 0, %s86
    %s90 = sphi 0, %s89
    %s106 = sphi 0, %s90
    %s112 = sphi 0, %s114
    %s115 = sphi 0, %s112
    %s116 = sphi 0, %s115
    %s132 = sphi 0, %s116
    %s138 = sphi 0, %s140
    %s141 = sphi 0, %s138
    %s142 = sphi 0, %s141
    %s158 = sphi 0, %s142
    %s162 = sphi 0, %s162
    %s164 = sphi 0, %s162
    %s165 = sphi 0, %s164
    %s179 = sphi 0, %s165
    %s183 = sphi 0, %s183
    %s185 = sphi 0, %s183
    %s186 = sphi 0, %s185
    %s200 = sphi 0, %s186
    %s204 = sphi 0, %s204
    %s206 = sphi 0, %s204
    %s207 = sphi 0, %s206
    %s221 = sphi 0, %s207
  $region4: #{rnn_model_forward.1} parent=0 // loop_header_branch
    %16 = sbr.rel (%p14) target = $region8
  $region5: #{rnn_model_forward.1} parent=0 // loop_body
    %s18 = ssub.s32 %s13, 1
    %s19 = ssub.s32 %s13, 2
    %s26 = sadd.s32 1, %s21
    %p27 = scmp.ge.s32.totalorder %s26, 1
    %s28 = scalar_select %p27, 0, %s26
    %s29 = sadd.s32 1, %s20
    %s30 = scalar_select %p27, %s29, %s20
    %p31 = scmp.ge.s32.totalorder %s30, 2
    %s32 = scalar_select %p31, 0, %s30
    %p33 = scmp.eq.s32.totalorder %s20, 0
    %s34 = scalar_select %p33, %s21, 0
    %p35 = scmp.eq.s32.totalorder %s32, 0
    %s36 = scalar_select %p35, %s28, 0
    %s37 = ssub.s32 %s34, %s36
    %p38 = scmp.eq.s32.totalorder %s37, 0
    %s40 = sadd.s32 %s39, 1
    %s41 = scalar_select %p38, %s39, %s40
    %p44 = pneg %p38
    %p45 = scmp.eq.s32.totalorder %s13, 1
    %p46 = por %p44, %p45
    %p47 = scmp.ne.s32.totalorder %s39, %s42
    %p48 = scmp.eq.s32.totalorder %s13, 0
    %p49 = por %p47, %p48
    %p50 = scmp.ne.s32.totalorder %s39, %s42
    %p51 = scmp.eq.s32.totalorder %s18, 1
    %p52 = por %p50, %p51
    %p53 = scmp.ne.s32.totalorder %s42, %s43
    %p54 = scmp.eq.s32.totalorder %s18, 0
    %p55 = por %p53, %p54
    %p56 = scmp.ne.s32.totalorder %s42, %s43
    %p57 = scmp.eq.s32.totalorder %s19, 1
    %p58 = por %p56, %p57
    %p60 = scmp.ne.s32.totalorder %s43, %s59
    %p61 = scmp.eq.s32.totalorder %s19, 0
    %p62 = por %p60, %p61
    %s64 = sadd.s32 %s63, 1
    %p67 = scmp.eq.s32.totalorder %s13, 1
    %p68 = scmp.ne.s32.totalorder %s63, %s65
    %p69 = scmp.eq.s32.totalorder %s13, 0
    %p70 = por %p68, %p69
    %p71 = scmp.ne.s32.totalorder %s63, %s65
    %p72 = scmp.eq.s32.totalorder %s18, 1
    %p73 = por %p71, %p72
    %p74 = scmp.ne.s32.totalorder %s65, %s66
    %p75 = scmp.eq.s32.totalorder %s18, 0
    %p76 = por %p74, %p75
    %p77 = scmp.ne.s32.totalorder %s65, %s66
    %p78 = scmp.eq.s32.totalorder %s19, 1
    %p79 = por %p77, %p78
    %p81 = scmp.ne.s32.totalorder %s66, %s80
    %p82 = scmp.eq.s32.totalorder %s19, 0
    %p83 = por %p81, %p82
    %s84 = ssub.s32 %s20, %s32
    %p85 = scmp.eq.s32.totalorder %s84, 0
    %s87 = sadd.s32 %s86, 1
    %s88 = scalar_select %p85, %s86, %s87
    %p91 = pneg %p85
    %p92 = scmp.eq.s32.totalorder %s13, 1
    %p93 = por %p91, %p92
    %p94 = scmp.ne.s32.totalorder %s86, %s89
    %p95 = scmp.eq.s32.totalorder %s13, 0
    %p96 = por %p94, %p95
    %p97 = scmp.ne.s32.totalorder %s86, %s89
    %p98 = scmp.eq.s32.totalorder %s18, 1
    %p99 = por %p97, %p98
    %p100 = scmp.ne.s32.totalorder %s89, %s90
    %p101 = scmp.eq.s32.totalorder %s18, 0
    %p102 = por %p100, %p101
    %p103 = scmp.ne.s32.totalorder %s89, %s90
    %p104 = scmp.eq.s32.totalorder %s19, 1
    %p105 = por %p103, %p104
    %p107 = scmp.ne.s32.totalorder %s90, %s106
    %p108 = scmp.eq.s32.totalorder %s19, 0
    %p109 = por %p107, %p108
    %s110 = ssub.s32 %s20, %s32
    %p111 = scmp.eq.s32.totalorder %s110, 0
    %s113 = sadd.s32 %s112, 1
    %s114 = scalar_select %p111, %s112, %s113
    %p117 = pneg %p111
    %p118 = scmp.eq.s32.totalorder %s13, 1
    %p119 = por %p117, %p118
    %p120 = scmp.ne.s32.totalorder %s112, %s115
    %p121 = scmp.eq.s32.totalorder %s13, 0
    %p122 = por %p120, %p121
    %p123 = scmp.ne.s32.totalorder %s112, %s115
    %p124 = scmp.eq.s32.totalorder %s18, 1
    %p125 = por %p123, %p124
    %p126 = scmp.ne.s32.totalorder %s115, %s116
    %p127 = scmp.eq.s32.totalorder %s18, 0
    %p128 = por %p126, %p127
    %p129 = scmp.ne.s32.totalorder %s115, %s116
    %p130 = scmp.eq.s32.totalorder %s19, 1
    %p131 = por %p129, %p130
    %p133 = scmp.ne.s32.totalorder %s116, %s132
    %p134 = scmp.eq.s32.totalorder %s19, 0
    %p135 = por %p133, %p134
    %s136 = ssub.s32 %s20, %s32
    %p137 = scmp.eq.s32.totalorder %s136, 0
    %s139 = sadd.s32 %s138, 1
    %s140 = scalar_select %p137, %s138, %s139
    %p143 = pneg %p137
    %p144 = scmp.eq.s32.totalorder %s13, 1
    %p145 = por %p143, %p144
    %p146 = scmp.ne.s32.totalorder %s138, %s141
    %p147 = scmp.eq.s32.totalorder %s13, 0
    %p148 = por %p146, %p147
    %p149 = scmp.ne.s32.totalorder %s138, %s141
    %p150 = scmp.eq.s32.totalorder %s18, 1
    %p151 = por %p149, %p150
    %p152 = scmp.ne.s32.totalorder %s141, %s142
    %p153 = scmp.eq.s32.totalorder %s18, 0
    %p154 = por %p152, %p153
    %p155 = scmp.ne.s32.totalorder %s141, %s142
    %p156 = scmp.eq.s32.totalorder %s19, 1
    %p157 = por %p155, %p156
    %p159 = scmp.ne.s32.totalorder %s142, %s158
    %p160 = scmp.eq.s32.totalorder %s19, 0
    %p161 = por %p159, %p160
    %s163 = sadd.s32 %s162, 1
    %p166 = scmp.eq.s32.totalorder %s13, 1
    %p167 = scmp.ne.s32.totalorder %s162, %s164
    %p168 = scmp.eq.s32.totalorder %s13, 0
    %p169 = por %p167, %p168
    %p170 = scmp.ne.s32.totalorder %s162, %s164
    %p171 = scmp.eq.s32.totalorder %s18, 1
    %p172 = por %p170, %p171
    %p173 = scmp.ne.s32.totalorder %s164, %s165
    %p174 = scmp.eq.s32.totalorder %s18, 0
    %p175 = por %p173, %p174
    %p176 = scmp.ne.s32.totalorder %s164, %s165
    %p177 = scmp.eq.s32.totalorder %s19, 1
    %p178 = por %p176, %p177
    %p180 = scmp.ne.s32.totalorder %s165, %s179
    %p181 = scmp.eq.s32.totalorder %s19, 0
    %p182 = por %p180, %p181
    %s184 = sadd.s32 %s183, 1
    %p187 = scmp.eq.s32.totalorder %s13, 1
    %p188 = scmp.ne.s32.totalorder %s183, %s185
    %p189 = scmp.eq.s32.totalorder %s13, 0
    %p190 = por %p188, %p189
    %p191 = scmp.ne.s32.totalorder %s183, %s185
    %p192 = scmp.eq.s32.totalorder %s18, 1
    %p193 = por %p191, %p192
    %p194 = scmp.ne.s32.totalorder %s185, %s186
    %p195 = scmp.eq.s32.totalorder %s18, 0
    %p196 = por %p194, %p195
    %p197 = scmp.ne.s32.totalorder %s185, %s186
    %p198 = scmp.eq.s32.totalorder %s19, 1
    %p199 = por %p197, %p198
    %p201 = scmp.ne.s32.totalorder %s186, %s200
    %p202 = scmp.eq.s32.totalorder %s19, 0
    %p203 = por %p201, %p202
    %s205 = sadd.s32 %s204, 1
    %p208 = scmp.eq.s32.totalorder %s13, 1
    %p209 = scmp.ne.s32.totalorder %s204, %s206
    %p210 = scmp.eq.s32.totalorder %s13, 0
    %p211 = por %p209, %p210
    %p212 = scmp.ne.s32.totalorder %s204, %s206
    %p213 = scmp.eq.s32.totalorder %s18, 1
    %p214 = por %p212, %p213
    %p215 = scmp.ne.s32.totalorder %s206, %s207
    %p216 = scmp.eq.s32.totalorder %s18, 0
    %p217 = por %p215, %p216
    %p218 = scmp.ne.s32.totalorder %s206, %s207
    %p219 = scmp.eq.s32.totalorder %s19, 1
    %p220 = por %p218, %p219
    %p222 = scmp.ne.s32.totalorder %s207, %s221
    %p223 = scmp.eq.s32.totalorder %s19, 0
    %p224 = por %p222, %p223
    %p225 = scmp.le.s32.totalorder 1, %s13
    %p226 = scmp.lt.s32.totalorder %s13, 3
    %p227 = pnand %p225, %p226
    %p228 = pneg %p227
    // Predicated region
    $region9: #{rnn_model_forward.1} parent=5 // pred_check
      _
    $region10: #{rnn_model_forward.1} parent=5 // pred_check_branch
      %230 = sbr.rel (%p227) target = $region12
    $region11: #{rnn_model_forward.1} parent=5 // pred_region
      %s231 = ssub.s32 %s13, 1
      // Predicated region
      $region13: #{rnn_model_forward.1} parent=11 // pred_check
        %p232 = pneg %p76
      $region14: #{rnn_model_forward.1} parent=11 // pred_check_branch
        %234 = sbr.rel (%p232) target = $region16
      $region15: #{rnn_model_forward.1} parent=11 // pred_region
        _
      $region16: #{rnn_model_forward.1} parent=11 // pred_fallthru
        _
      // Predicated region
      $region17: #{rnn_model_forward.1} parent=11 // pred_check
        %p235 = pneg %p175
      $region18: #{rnn_model_forward.1} parent=11 // pred_check_branch
        %237 = sbr.rel (%p235) target = $region20
      $region19: #{rnn_model_forward.1} parent=11 // pred_region
        _
      $region20: #{rnn_model_forward.1} parent=11 // pred_fallthru
        _
      // Predicated region
      $region21: #{rnn_model_forward.1} parent=11 // pred_check
        %p238 = pneg %p196
      $region22: #{rnn_model_forward.1} parent=11 // pred_check_branch
        %240 = sbr.rel (%p238) target = $region24
      $region23: #{rnn_model_forward.1} parent=11 // pred_region
        _
      $region24: #{rnn_model_forward.1} parent=11 // pred_fallthru
        _
    $region12: #{rnn_model_forward.1} parent=5 // pred_fallthru
      _
    %p241 = scmp.lt.s32.totalorder %s13, 2
    // Predicated region
    $region25: #{rnn_model_forward.1} parent=5 // pred_check
      %p242 = pneg %p241
    $region26: #{rnn_model_forward.1} parent=5 // pred_check_branch
      %244 = sbr.rel (%p242) target = $region28
    $region27: #{rnn_model_forward.1} parent=5 // pred_region
      // Predicated region
      $region29: #{rnn_model_forward.1} parent=27 // pred_check
        %p245 = pneg %p49
      $region30: #{rnn_model_forward.1} parent=27 // pred_check_branch
        %247 = sbr.rel (%p245) target = $region32
      $region31: #{rnn_model_forward.1} parent=27 // pred_region
        %p248 = scmp.eq.s32.totalorder %s20, 0
        %s249 = scalar_select %p248, %s21, 0
        %s250 = smul.u32 8, %s249
        %p251 = scmp.lt.s32.totalorder %s250, 7
        %s252 = scalar_select %p251, %s250, 7
        %s253 = smul.addr %s252, 8
        %s254 = scalar_lea.vmem %s0, %s253
        %p255 = scmp.eq.s32.totalorder %s20, 0
        %s256 = scalar_select %p255, %s21, 0
        %s257 = smul.u32 8, %s256
      $region32: #{rnn_model_forward.1} parent=27 // pred_fallthru
        _
      // Predicated region
      $region33: #{rnn_model_forward.1} parent=27 // pred_check
        %p258 = pneg %p96
      $region34: #{rnn_model_forward.1} parent=27 // pred_check_branch
        %260 = sbr.rel (%p258) target = $region36
      $region35: #{rnn_model_forward.1} parent=27 // pred_region
        %p261 = scmp.lt.s32.totalorder %s20, 1
        %s262 = scalar_select %p261, %s20, 1
        %s263 = smul.addr %s262, 16
        %s264 = smul.addr %s263, 8
        %s265 = scalar_lea.vmem %s2, %s264
      $region36: #{rnn_model_forward.1} parent=27 // pred_fallthru
        _
      // Predicated region
      $region37: #{rnn_model_forward.1} parent=27 // pred_check
        %p266 = pneg %p122
      $region38: #{rnn_model_forward.1} parent=27 // pred_check_branch
        %268 = sbr.rel (%p266) target = $region40
      $region39: #{rnn_model_forward.1} parent=27 // pred_region
        %p269 = scmp.lt.s32.totalorder %s20, 1
        %s270 = scalar_select %p269, %s20, 1
        %s271 = smul.addr %s270, 16
        %s272 = smul.addr %s271, 8
        %s273 = scalar_lea.vmem %s3, %s272
      $region40: #{rnn_model_forward.1} parent=27 // pred_fallthru
        _
      // Predicated region
      $region41: #{rnn_model_forward.1} parent=27 // pred_check
        %p274 = pneg %p148
      $region42: #{rnn_model_forward.1} parent=27 // pred_check_branch
        %276 = sbr.rel (%p274) target = $region44
      $region43: #{rnn_model_forward.1} parent=27 // pred_region
        %p277 = scmp.lt.s32.totalorder %s20, 1
        %s278 = scalar_select %p277, %s20, 1
        %s279 = scalar_lea.vmem %s4, %s278
      $region44: #{rnn_model_forward.1} parent=27 // pred_fallthru
        _
    $region28: #{rnn_model_forward.1} parent=5 // pred_fallthru
      _
    %p280 = scmp.le.s32.totalorder 1, %s13
    %p281 = scmp.lt.s32.totalorder %s13, 3
    %p282 = pnand %p280, %p281
    %p283 = pneg %p282
    // Predicated region
    $region45: #{rnn_model_forward.1} parent=5 // pred_check
      _
    $region46: #{rnn_model_forward.1} parent=5 // pred_check_branch
      %285 = sbr.rel (%p282) target = $region48
    $region47: #{rnn_model_forward.1} parent=5 // pred_region
      %s286 = ssub.s32 %s13, 1
      %p287 = scmp.eq.s32.totalorder %s22, 0
      %s288 = scalar_select %p287, %s23, 0
      %s289 = smul.u32 8, %s288
      %p290 = scmp.lt.s32.totalorder %s289, 7
      %s291 = scalar_select %p290, %s289, 7
      %s292 = smul.addr %s291, 8
      %s293 = scalar_lea.vmem %s0, %s292
      %p294 = pneg %p55
      %p295 = pneg %p52
      %p296 = pneg %p76
      %p297 = pneg %p73
      %p298 = scmp.lt.s32.totalorder %s22, 1
      %s299 = scalar_select %p298, %s22, 1
      %s300 = smul.addr %s299, 16
      %s301 = smul.addr %s300, 8
      %s302 = scalar_lea.vmem %s2, %s301
      %p303 = pneg %p102
      %p304 = pneg %p99
      %p305 = scmp.lt.s32.totalorder %s22, 1
      %s306 = scalar_select %p305, %s22, 1
      %s307 = smul.addr %s306, 16
      %s308 = smul.addr %s307, 8
      %s309 = scalar_lea.vmem %s3, %s308
      %p310 = pneg %p128
      %p311 = pneg %p125
      %p312 = scmp.lt.s32.totalorder %s22, 1
      %s313 = scalar_select %p312, %s22, 1
      %s314 = scalar_lea.vmem %s4, %s313
      %p315 = pneg %p154
      %p316 = pneg %p151
      %p317 = pneg %p175
      %p318 = pneg %p172
      %p319 = pneg %p196
      %p320 = pneg %p193
      %p321 = pneg %p217
      %p322 = pneg %p214
      %p323 = scmp.eq.s32.totalorder %s22, 0
      %s324 = scalar_select %p323, %s23, 0
      %s325 = smul.u32 8, %s324
      %p326 = scmp.lt.s32.totalorder %s325, 7
      %s327 = scalar_select %p326, %s325, 7
      %s328 = smul.addr %s327, 8
      %s329 = scalar_lea.vmem %s0, %s328
      %p330 = scmp.eq.s32.totalorder %s22, 0
      %s331 = scalar_select %p330, %s23, 0
      %s332 = smul.u32 8, %s331
      %p333 = scmp.lt.s32.totalorder %s22, 1
      %s334 = scalar_select %p333, %s22, 1
      %s335 = smul.addr %s334, 16
      %s336 = smul.addr %s335, 8
      %s337 = scalar_lea.vmem %s2, %s336
      %p338 = scmp.lt.s32.totalorder %s22, 1
      %s339 = scalar_select %p338, %s22, 1
      %s340 = smul.addr %s339, 16
      %s341 = smul.addr %s340, 8
      %s342 = scalar_lea.vmem %s3, %s341
      %p343 = scmp.lt.s32.totalorder %s22, 1
      %s344 = scalar_select %p343, %s22, 1
      %s345 = scalar_lea.vmem %s4, %s344
      %v346 = vld [vmem:[%s345] sm:$0x1]
      %p347 = scmp.eq.s32.totalorder %s23, 0
      // Predicated region
      $region49: #{rnn_model_forward.1} parent=47 // pred_check
        %p348 = pneg %p347
      $region50: #{rnn_model_forward.1} parent=47 // pred_check_branch
        %350 = sbr.rel (%p348) target = $region52
      $region51: #{rnn_model_forward.1} parent=47 // pred_region
        %351 = vst [vmem:[#allocation3] sm:$0xff] 0.0
      $region52: #{rnn_model_forward.1} parent=47 // pred_fallthru
        _
      %p352 = scmp.eq.s32.totalorder %s22, 0
      // Predicated region
      $region53: #{rnn_model_forward.1} parent=47 // pred_check
        %p353 = pneg %p352
      $region54: #{rnn_model_forward.1} parent=47 // pred_check_branch
        %355 = sbr.rel (%p353) target = $region56
      $region55: #{rnn_model_forward.1} parent=47 // pred_region
        %v356 = vld [vmem:[%s329] sm:$0xff]
        %v357 = vld [vmem:[%s329 + $0x8] sm:$0xff]
        %v358 = vld [vmem:[%s329 + $0x10] sm:$0xff]
        %v359 = vld [vmem:[%s329 + $0x18] sm:$0xff]
        %v360 = vld [vmem:[%s329 + $0x20] sm:$0xff]
        %v361 = vld [vmem:[%s329 + $0x28] sm:$0xff]
        %v362 = vld [vmem:[%s329 + $0x30] sm:$0xff]
        %v363 = vld [vmem:[%s329 + $0x38] sm:$0xff]
        %v364 = vld [vmem:[%s1] sm:$0xff]
        %v365 = vld [vmem:[%s1 + $0x8] sm:$0xff]
        %v366 = vld [vmem:[%s1 + $0x10] sm:$0xff]
        %v367 = vld [vmem:[%s1 + $0x18] sm:$0xff]
        %v368 = vld [vmem:[%s1 + $0x20] sm:$0xff]
        %v369 = vld [vmem:[%s1 + $0x28] sm:$0xff]
        %v370 = vld [vmem:[%s1 + $0x30] sm:$0xff]
        %v371 = vld [vmem:[%s1 + $0x38] sm:$0xff]
        %v372 = vld [vmem:[%s1 + $0x40] sm:$0xff]
        %v373 = vld [vmem:[%s1 + $0x48] sm:$0xff]
        %v374 = vld [vmem:[%s1 + $0x50] sm:$0xff]
        %v375 = vld [vmem:[%s1 + $0x58] sm:$0xff]
        %v376 = vld [vmem:[%s1 + $0x60] sm:$0xff]
        %v377 = vld [vmem:[%s1 + $0x68] sm:$0xff]
        %v378 = vld [vmem:[%s1 + $0x70] sm:$0xff]
        %v379 = vld [vmem:[%s1 + $0x78] sm:$0xff]
        %v381 = vperm.slane %v346, 0
        %383 = vmatpush.msra.mxu0 %v379
        %384 = vmatpush.msra.mxu0 %v378
        %385 = vmatpush.msra.mxu0 %v377
        %386 = vmatpush.msra.mxu0 %v376
        %387 = vmatpush.msra.mxu0 %v375
        %388 = vmatpush.msra.mxu0 %v374
        %389 = vmatpush.msra.mxu0 %v373
        %390 = vmatpush.msra.mxu0 %v372
        %391 = vmatpush.msra.mxu0 %v371
        %392 = vmatpush.msra.mxu0 %v370
        %393 = vmatpush.msra.mxu0 %v369
        %394 = vmatpush.msra.mxu0 %v368
        %395 = vmatpush.msra.mxu0 %v367
        %396 = vmatpush.msra.mxu0 %v366
        %397 = vmatpush.msra.mxu0 %v365
        %398 = vmatpush.msra.mxu0 %v364
        %399 = vmatmul.f32.gmra.mxu0 %v356
        %v400 = vpop.f32.mrf.mxu0
        %v401 = vadd.f32 %v381, %v400
        %402 = vmatmul.f32.gmra.mxu0 %v357
        %v403 = vpop.f32.mrf.mxu0
        %v404 = vadd.f32 %v381, %v403
        %405 = vmatmul.f32.gmra.mxu0 %v358
        %v406 = vpop.f32.mrf.mxu0
        %v407 = vadd.f32 %v381, %v406
        %408 = vmatmul.f32.gmra.mxu0 %v359
        %v409 = vpop.f32.mrf.mxu0
        %v410 = vadd.f32 %v381, %v409
        %411 = vmatmul.f32.gmra.mxu0 %v360
        %v412 = vpop.f32.mrf.mxu0
        %v413 = vadd.f32 %v381, %v412
        %414 = vmatmul.f32.gmra.mxu0 %v361
        %v415 = vpop.f32.mrf.mxu0
        %v416 = vadd.f32 %v381, %v415
        %417 = vmatmul.f32.gmra.mxu0 %v362
        %v418 = vpop.f32.mrf.mxu0
        %v419 = vadd.f32 %v381, %v418
        %420 = vmatmul.f32.gmra.mxu0 %v363
        %v421 = vpop.f32.mrf.mxu0
        %v422 = vadd.f32 %v381, %v421
        %423 = vdwg.mxu0
        %424 = vst [vmem:[#allocation4] sm:$0xff] %v401
        %425 = vst [vmem:[#allocation4 + $0x8] sm:$0xff] %v404
        %426 = vst [vmem:[#allocation4 + $0x10] sm:$0xff] %v407
        %427 = vst [vmem:[#allocation4 + $0x18] sm:$0xff] %v410
        %428 = vst [vmem:[#allocation4 + $0x20] sm:$0xff] %v413
        %429 = vst [vmem:[#allocation4 + $0x28] sm:$0xff] %v416
        %430 = vst [vmem:[#allocation4 + $0x30] sm:$0xff] %v419
        %431 = vst [vmem:[#allocation4 + $0x38] sm:$0xff] %v422
      $region56: #{rnn_model_forward.1} parent=47 // pred_fallthru
        _
      %p432 = scmp.gt.s32.totalorder %s22, 0
      // Predicated region
      $region57: #{rnn_model_forward.1} parent=47 // pred_check
        %p433 = pneg %p432
      $region58: #{rnn_model_forward.1} parent=47 // pred_check_branch
        %435 = sbr.rel (%p433) target = $region60
      $region59: #{rnn_model_forward.1} parent=47 // pred_region
        %s436 = smul.u32 %s23, 8
        %s437 = smul.u32 %s436, 8
        %s438 = scalar_lea.vmem [#allocation2], %s437
        %v439 = vld [vmem:[%s438] sm:$0xff]
        %v440 = vld [vmem:[%s438 + $0x8] sm:$0xff]
        %v441 = vld [vmem:[%s438 + $0x10] sm:$0xff]
        %v442 = vld [vmem:[%s438 + $0x18] sm:$0xff]
        %v443 = vld [vmem:[%s438 + $0x20] sm:$0xff]
        %v444 = vld [vmem:[%s438 + $0x28] sm:$0xff]
        %v445 = vld [vmem:[%s438 + $0x30] sm:$0xff]
        %v446 = vld [vmem:[%s438 + $0x38] sm:$0xff]
        %v447 = vld [vmem:[%s337] sm:$0xff]
        %v448 = vld [vmem:[%s337 + $0x8] sm:$0xff]
        %v449 = vld [vmem:[%s337 + $0x10] sm:$0xff]
        %v450 = vld [vmem:[%s337 + $0x18] sm:$0xff]
        %v451 = vld [vmem:[%s337 + $0x20] sm:$0xff]
        %v452 = vld [vmem:[%s337 + $0x28] sm:$0xff]
        %v453 = vld [vmem:[%s337 + $0x30] sm:$0xff]
        %v454 = vld [vmem:[%s337 + $0x38] sm:$0xff]
        %v455 = vld [vmem:[%s337 + $0x40] sm:$0xff]
        %v456 = vld [vmem:[%s337 + $0x48] sm:$0xff]
        %v457 = vld [vmem:[%s337 + $0x50] sm:$0xff]
        %v458 = vld [vmem:[%s337 + $0x58] sm:$0xff]
        %v459 = vld [vmem:[%s337 + $0x60] sm:$0xff]
        %v460 = vld [vmem:[%s337 + $0x68] sm:$0xff]
        %v461 = vld [vmem:[%s337 + $0x70] sm:$0xff]
        %v462 = vld [vmem:[%s337 + $0x78] sm:$0xff]
        %v464 = vperm.slane %v346, 0
        %466 = vmatpush.msra.mxu0 %v462
        %467 = vmatpush.msra.mxu0 %v461
        %468 = vmatpush.msra.mxu0 %v460
        %469 = vmatpush.msra.mxu0 %v459
        %470 = vmatpush.msra.mxu0 %v458
        %471 = vmatpush.msra.mxu0 %v457
        %472 = vmatpush.msra.mxu0 %v456
        %473 = vmatpush.msra.mxu0 %v455
        %474 = vmatpush.msra.mxu0 %v454
        %475 = vmatpush.msra.mxu0 %v453
        %476 = vmatpush.msra.mxu0 %v452
        %477 = vmatpush.msra.mxu0 %v451
        %478 = vmatpush.msra.mxu0 %v450
        %479 = vmatpush.msra.mxu0 %v449
        %480 = vmatpush.msra.mxu0 %v448
        %481 = vmatpush.msra.mxu0 %v447
        %482 = vmatmul.f32.gmra.mxu0 %v439
        %v483 = vpop.f32.mrf.mxu0
        %v484 = vadd.f32 %v464, %v483
        %485 = vmatmul.f32.gmra.mxu0 %v440
        %v486 = vpop.f32.mrf.mxu0
        %v487 = vadd.f32 %v464, %v486
        %488 = vmatmul.f32.gmra.mxu0 %v441
        %v489 = vpop.f32.mrf.mxu0
        %v490 = vadd.f32 %v464, %v489
        %491 = vmatmul.f32.gmra.mxu0 %v442
        %v492 = vpop.f32.mrf.mxu0
        %v493 = vadd.f32 %v464, %v492
        %494 = vmatmul.f32.gmra.mxu0 %v443
        %v495 = vpop.f32.mrf.mxu0
        %v496 = vadd.f32 %v464, %v495
        %497 = vmatmul.f32.gmra.mxu0 %v444
        %v498 = vpop.f32.mrf.mxu0
        %v499 = vadd.f32 %v464, %v498
        %500 = vmatmul.f32.gmra.mxu0 %v445
        %v501 = vpop.f32.mrf.mxu0
        %v502 = vadd.f32 %v464, %v501
        %503 = vmatmul.f32.gmra.mxu0 %v446
        %v504 = vpop.f32.mrf.mxu0
        %v505 = vadd.f32 %v464, %v504
        %506 = vdwg.mxu0
        %507 = vst [vmem:[#allocation4] sm:$0xff] %v484
        %508 = vst [vmem:[#allocation4 + $0x8] sm:$0xff] %v487
        %509 = vst [vmem:[#allocation4 + $0x10] sm:$0xff] %v490
        %510 = vst [vmem:[#allocation4 + $0x18] sm:$0xff] %v493
        %511 = vst [vmem:[#allocation4 + $0x20] sm:$0xff] %v496
        %512 = vst [vmem:[#allocation4 + $0x28] sm:$0xff] %v499
        %513 = vst [vmem:[#allocation4 + $0x30] sm:$0xff] %v502
        %514 = vst [vmem:[#allocation4 + $0x38] sm:$0xff] %v505
      $region60: #{rnn_model_forward.1} parent=47 // pred_fallthru
        _
      %v515 = vld [vmem:[%s342] sm:$0xff]
      %v516 = vld [vmem:[%s342 + $0x8] sm:$0xff]
      %v517 = vld [vmem:[%s342 + $0x10] sm:$0xff]
      %v518 = vld [vmem:[%s342 + $0x18] sm:$0xff]
      %v519 = vld [vmem:[%s342 + $0x20] sm:$0xff]
      %v520 = vld [vmem:[%s342 + $0x28] sm:$0xff]
      %v521 = vld [vmem:[%s342 + $0x30] sm:$0xff]
      %v522 = vld [vmem:[%s342 + $0x38] sm:$0xff]
      %v523 = vld [vmem:[%s342 + $0x40] sm:$0xff]
      %v524 = vld [vmem:[%s342 + $0x48] sm:$0xff]
      %v525 = vld [vmem:[%s342 + $0x50] sm:$0xff]
      %v526 = vld [vmem:[%s342 + $0x58] sm:$0xff]
      %v527 = vld [vmem:[%s342 + $0x60] sm:$0xff]
      %v528 = vld [vmem:[%s342 + $0x68] sm:$0xff]
      %v529 = vld [vmem:[%s342 + $0x70] sm:$0xff]
      %v530 = vld [vmem:[%s342 + $0x78] sm:$0xff]
      %v531 = vld [vmem:[#allocation3] sm:$0xff]
      %v532 = vld [vmem:[#allocation4] sm:$0xff]
      %533 = vmatpush.msra.mxu0 %v530
      %534 = vmatpush.msra.mxu0 %v529
      %535 = vmatpush.msra.mxu0 %v528
      %536 = vmatpush.msra.mxu0 %v527
      %537 = vmatpush.msra.mxu0 %v526
      %538 = vmatpush.msra.mxu0 %v525
      %539 = vmatpush.msra.mxu0 %v524
      %540 = vmatpush.msra.mxu0 %v523
      %541 = vmatpush.msra.mxu0 %v522
      %542 = vmatpush.msra.mxu0 %v521
      %543 = vmatpush.msra.mxu0 %v520
      %544 = vmatpush.msra.mxu0 %v519
      %545 = vmatpush.msra.mxu0 %v518
      %546 = vmatpush.msra.mxu0 %v517
      %547 = vmatpush.msra.mxu0 %v516
      %548 = vmatpush.msra.mxu0 %v515
      %549 = vmatmul.f32.gmra.mxu0 %v531
      %v550 = vpop.f32.mrf.mxu0
      %v551 = vadd.f32 0.0, %v550
      %552 = vdwg.mxu0
      %v553 = vadd.f32 %v532, %v551
      %v554 = vtanh.pop %v553
      %s555 = smul.u32 %s23, 8
      %s556 = smul.u32 %s555, 8
      %s557 = scalar_lea.vmem [#allocation2], %s556
      %558 = vst [vmem:[%s557] sm:$0xff] %v554
      %s559 = scalar_lea.vmem [#allocation4], 8
      %v560 = vld [vmem:[%s559] sm:$0xff]
      %561 = vmatpush.msra.mxu0 %v530
      %562 = vmatpush.msra.mxu0 %v529
      %563 = vmatpush.msra.mxu0 %v528
      %564 = vmatpush.msra.mxu0 %v527
      %565 = vmatpush.msra.mxu0 %v526
      %566 = vmatpush.msra.mxu0 %v525
      %567 = vmatpush.msra.mxu0 %v524
      %568 = vmatpush.msra.mxu0 %v523
      %569 = vmatpush.msra.mxu0 %v522
      %570 = vmatpush.msra.mxu0 %v521
      %571 = vmatpush.msra.mxu0 %v520
      %572 = vmatpush.msra.mxu0 %v519
      %573 = vmatpush.msra.mxu0 %v518
      %574 = vmatpush.msra.mxu0 %v517
      %575 = vmatpush.msra.mxu0 %v516
      %576 = vmatpush.msra.mxu0 %v515
      %577 = vmatmul.f32.gmra.mxu0 %v554
      %v578 = vpop.f32.mrf.mxu0
      %v579 = vadd.f32 0.0, %v578
      %580 = vdwg.mxu0
      %v581 = vadd.f32 %v560, %v579
      %v582 = vtanh.pop %v581
      %s583 = sadd.s32 %s555, 1
      %s584 = smul.u32 %s583, 8
      %s585 = scalar_lea.vmem [#allocation2], %s584
      %586 = vst [vmem:[%s585] sm:$0xff] %v582
      %s587 = scalar_lea.vmem [#allocation4], 16
      %v588 = vld [vmem:[%s587] sm:$0xff]
      %589 = vmatpush.msra.mxu0 %v530
      %590 = vmatpush.msra.mxu0 %v529
      %591 = vmatpush.msra.mxu0 %v528
      %592 = vmatpush.msra.mxu0 %v527
      %593 = vmatpush.msra.mxu0 %v526
      %594 = vmatpush.msra.mxu0 %v525
      %595 = vmatpush.msra.mxu0 %v524
      %596 = vmatpush.msra.mxu0 %v523
      %597 = vmatpush.msra.mxu0 %v522
      %598 = vmatpush.msra.mxu0 %v521
      %599 = vmatpush.msra.mxu0 %v520
      %600 = vmatpush.msra.mxu0 %v519
      %601 = vmatpush.msra.mxu0 %v518
      %602 = vmatpush.msra.mxu0 %v517
      %603 = vmatpush.msra.mxu0 %v516
      %604 = vmatpush.msra.mxu0 %v515
      %605 = vmatmul.f32.gmra.mxu0 %v582
      %v606 = vpop.f32.mrf.mxu0
      %v607 = vadd.f32 0.0, %v606
      %608 = vdwg.mxu0
      %v609 = vadd.f32 %v588, %v607
      %v610 = vtanh.pop %v609
      %s611 = sadd.s32 %s555, 2
      %s612 = smul.u32 %s611, 8
      %s613 = scalar_lea.vmem [#allocation2], %s612
      %614 = vst [vmem:[%s613] sm:$0xff] %v610
      %s615 = scalar_lea.vmem [#allocation4], 24
      %v616 = vld [vmem:[%s615] sm:$0xff]
      %617 = vmatpush.msra.mxu0 %v530
      %618 = vmatpush.msra.mxu0 %v529
      %619 = vmatpush.msra.mxu0 %v528
      %620 = vmatpush.msra.mxu0 %v527
      %621 = vmatpush.msra.mxu0 %v526
      %622 = vmatpush.msra.mxu0 %v525
      %623 = vmatpush.msra.mxu0 %v524
      %624 = vmatpush.msra.mxu0 %v523
      %625 = vmatpush.msra.mxu0 %v522
      %626 = vmatpush.msra.mxu0 %v521
      %627 = vmatpush.msra.mxu0 %v520
      %628 = vmatpush.msra.mxu0 %v519
      %629 = vmatpush.msra.mxu0 %v518
      %630 = vmatpush.msra.mxu0 %v517
      %631 = vmatpush.msra.mxu0 %v516
      %632 = vmatpush.msra.mxu0 %v515
      %633 = vmatmul.f32.gmra.mxu0 %v610
      %v634 = vpop.f32.mrf.mxu0
      %v635 = vadd.f32 0.0, %v634
      %636 = vdwg.mxu0
      %v637 = vadd.f32 %v616, %v635
      %v638 = vtanh.pop %v637
      %s639 = sadd.s32 %s555, 3
      %s640 = smul.u32 %s639, 8
      %s641 = scalar_lea.vmem [#allocation2], %s640
      %642 = vst [vmem:[%s641] sm:$0xff] %v638
      %s643 = scalar_lea.vmem [#allocation4], 32
      %v644 = vld [vmem:[%s643] sm:$0xff]
      %645 = vmatpush.msra.mxu0 %v530
      %646 = vmatpush.msra.mxu0 %v529
      %647 = vmatpush.msra.mxu0 %v528
      %648 = vmatpush.msra.mxu0 %v527
      %649 = vmatpush.msra.mxu0 %v526
      %650 = vmatpush.msra.mxu0 %v525
      %651 = vmatpush.msra.mxu0 %v524
      %652 = vmatpush.msra.mxu0 %v523
      %653 = vmatpush.msra.mxu0 %v522
      %654 = vmatpush.msra.mxu0 %v521
      %655 = vmatpush.msra.mxu0 %v520
      %656 = vmatpush.msra.mxu0 %v519
      %657 = vmatpush.msra.mxu0 %v518
      %658 = vmatpush.msra.mxu0 %v517
      %659 = vmatpush.msra.mxu0 %v516
      %660 = vmatpush.msra.mxu0 %v515
      %661 = vmatmul.f32.gmra.mxu0 %v638
      %v662 = vpop.f32.mrf.mxu0
      %v663 = vadd.f32 0.0, %v662
      %664 = vdwg.mxu0
      %v665 = vadd.f32 %v644, %v663
      %v666 = vtanh.pop %v665
      %s667 = sadd.s32 %s555, 4
      %s668 = smul.u32 %s667, 8
      %s669 = scalar_lea.vmem [#allocation2], %s668
      %670 = vst [vmem:[%s669] sm:$0xff] %v666
      %s671 = scalar_lea.vmem [#allocation4], 40
      %v672 = vld [vmem:[%s671] sm:$0xff]
      %673 = vmatpush.msra.mxu0 %v530
      %674 = vmatpush.msra.mxu0 %v529
      %675 = vmatpush.msra.mxu0 %v528
      %676 = vmatpush.msra.mxu0 %v527
      %677 = vmatpush.msra.mxu0 %v526
      %678 = vmatpush.msra.mxu0 %v525
      %679 = vmatpush.msra.mxu0 %v524
      %680 = vmatpush.msra.mxu0 %v523
      %681 = vmatpush.msra.mxu0 %v522
      %682 = vmatpush.msra.mxu0 %v521
      %683 = vmatpush.msra.mxu0 %v520
      %684 = vmatpush.msra.mxu0 %v519
      %685 = vmatpush.msra.mxu0 %v518
      %686 = vmatpush.msra.mxu0 %v517
      %687 = vmatpush.msra.mxu0 %v516
      %688 = vmatpush.msra.mxu0 %v515
      %689 = vmatmul.f32.gmra.mxu0 %v666
      %v690 = vpop.f32.mrf.mxu0
      %v691 = vadd.f32 0.0, %v690
      %692 = vdwg.mxu0
      %v693 = vadd.f32 %v672, %v691
      %v694 = vtanh.pop %v693
      %s695 = sadd.s32 %s555, 5
      %s696 = smul.u32 %s695, 8
      %s697 = scalar_lea.vmem [#allocation2], %s696
      %698 = vst [vmem:[%s697] sm:$0xff] %v694
      %s699 = scalar_lea.vmem [#allocation4], 48
      %v700 = vld [vmem:[%s699] sm:$0xff]
      %701 = vmatpush.msra.mxu0 %v530
      %702 = vmatpush.msra.mxu0 %v529
      %703 = vmatpush.msra.mxu0 %v528
      %704 = vmatpush.msra.mxu0 %v527
      %705 = vmatpush.msra.mxu0 %v526
      %706 = vmatpush.msra.mxu0 %v525
      %707 = vmatpush.msra.mxu0 %v524
      %708 = vmatpush.msra.mxu0 %v523
      %709 = vmatpush.msra.mxu0 %v522
      %710 = vmatpush.msra.mxu0 %v521
      %711 = vmatpush.msra.mxu0 %v520
      %712 = vmatpush.msra.mxu0 %v519
      %713 = vmatpush.msra.mxu0 %v518
      %714 = vmatpush.msra.mxu0 %v517
      %715 = vmatpush.msra.mxu0 %v516
      %716 = vmatpush.msra.mxu0 %v515
      %717 = vmatmul.f32.gmra.mxu0 %v694
      %v718 = vpop.f32.mrf.mxu0
      %v719 = vadd.f32 0.0, %v718
      %720 = vdwg.mxu0
      %v721 = vadd.f32 %v700, %v719
      %v722 = vtanh.pop %v721
      %s723 = sadd.s32 %s555, 6
      %s724 = smul.u32 %s723, 8
      %s725 = scalar_lea.vmem [#allocation2], %s724
      %726 = vst [vmem:[%s725] sm:$0xff] %v722
      %s727 = scalar_lea.vmem [#allocation4], 56
      %v728 = vld [vmem:[%s727] sm:$0xff]
      %729 = vmatpush.msra.mxu0 %v530
      %730 = vmatpush.msra.mxu0 %v529
      %731 = vmatpush.msra.mxu0 %v528
      %732 = vmatpush.msra.mxu0 %v527
      %733 = vmatpush.msra.mxu0 %v526
      %734 = vmatpush.msra.mxu0 %v525
      %735 = vmatpush.msra.mxu0 %v524
      %736 = vmatpush.msra.mxu0 %v523
      %737 = vmatpush.msra.mxu0 %v522
      %738 = vmatpush.msra.mxu0 %v521
      %739 = vmatpush.msra.mxu0 %v520
      %740 = vmatpush.msra.mxu0 %v519
      %741 = vmatpush.msra.mxu0 %v518
      %742 = vmatpush.msra.mxu0 %v517
      %743 = vmatpush.msra.mxu0 %v516
      %744 = vmatpush.msra.mxu0 %v515
      %745 = vmatmul.f32.gmra.mxu0 %v722
      %v746 = vpop.f32.mrf.mxu0
      %v747 = vadd.f32 0.0, %v746
      %748 = vdwg.mxu0
      %v749 = vadd.f32 %v728, %v747
      %v750 = vtanh.pop %v749
      %s751 = sadd.s32 %s555, 7
      %s752 = smul.u32 %s751, 8
      %s753 = scalar_lea.vmem [#allocation2], %s752
      %754 = vst [vmem:[%s753] sm:$0xff] %v750
      %755 = vst [vmem:[#allocation3] sm:$0xff] %v750
      %p756 = scmp.eq.s32.totalorder %s22, 1
      %p757 = pnand %p756, %p347
      %p758 = pneg %p757
      // Predicated region
      $region61: #{rnn_model_forward.1} parent=47 // pred_check
        _
      $region62: #{rnn_model_forward.1} parent=47 // pred_check_branch
        %760 = sbr.rel (%p757) target = $region64
      $region63: #{rnn_model_forward.1} parent=47 // pred_region
        %v761 = vld [vmem:[%s5] sm:$0xff]
        %v762 = vld [vmem:[%s5 + $0x8] sm:$0xff]
        %v763 = vld [vmem:[%s5 + $0x10] sm:$0xff]
        %v764 = vld [vmem:[%s5 + $0x18] sm:$0xff]
        %v765 = vld [vmem:[%s5 + $0x20] sm:$0xff]
        %v766 = vld [vmem:[%s5 + $0x28] sm:$0xff]
        %v767 = vld [vmem:[%s5 + $0x30] sm:$0xff]
        %v768 = vld [vmem:[%s5 + $0x38] sm:$0xff]
        %v769 = vld [vmem:[%s5 + $0x40] sm:$0xff]
        %v770 = vld [vmem:[%s5 + $0x48] sm:$0xff]
        %v771 = vld [vmem:[%s5 + $0x50] sm:$0xff]
        %v772 = vld [vmem:[%s5 + $0x58] sm:$0xff]
        %v773 = vld [vmem:[%s5 + $0x60] sm:$0xff]
        %v774 = vld [vmem:[%s5 + $0x68] sm:$0xff]
        %v775 = vld [vmem:[%s5 + $0x70] sm:$0xff]
        %v776 = vld [vmem:[%s5 + $0x78] sm:$0xff]
        %v777 = vld [vmem:[%s6] sm:$0x1]
        %v779 = vperm.slane %v777, 0
        %781 = vmatpush.msra.mxu0 %v776
        %782 = vmatpush.msra.mxu0 %v775
        %783 = vmatpush.msra.mxu0 %v774
        %784 = vmatpush.msra.mxu0 %v773
        %785 = vmatpush.msra.mxu0 %v772
        %786 = vmatpush.msra.mxu0 %v771
        %787 = vmatpush.msra.mxu0 %v770
        %788 = vmatpush.msra.mxu0 %v769
        %789 = vmatpush.msra.mxu0 %v768
        %790 = vmatpush.msra.mxu0 %v767
        %791 = vmatpush.msra.mxu0 %v766
        %792 = vmatpush.msra.mxu0 %v765
        %793 = vmatpush.msra.mxu0 %v764
        %794 = vmatpush.msra.mxu0 %v763
        %795 = vmatpush.msra.mxu0 %v762
        %796 = vmatpush.msra.mxu0 %v761
        %797 = vmatmul.f32.gmra.mxu0 %v750
        %v798 = vpop.f32.mrf.mxu0
        %v799 = vadd.f32 %v779, %v798
        %800 = vdwg.mxu0
        %801 = vst [vmem:[%s7] sm:$0xff] %v799
      $region64: #{rnn_model_forward.1} parent=47 // pred_fallthru
        _
      // Predicated region
      $region65: #{rnn_model_forward.1} parent=47 // pred_check
        %p802 = pneg %p214
      $region66: #{rnn_model_forward.1} parent=47 // pred_check_branch
        %804 = sbr.rel (%p802) target = $region68
      $region67: #{rnn_model_forward.1} parent=47 // pred_region
        _
      $region68: #{rnn_model_forward.1} parent=47 // pred_fallthru
        _
      // Predicated region
      $region69: #{rnn_model_forward.1} parent=47 // pred_check
        %p805 = pneg %p214
      $region70: #{rnn_model_forward.1} parent=47 // pred_check_branch
        %807 = sbr.rel (%p805) target = $region72
      $region71: #{rnn_model_forward.1} parent=47 // pred_region
        _
      $region72: #{rnn_model_forward.1} parent=47 // pred_fallthru
        _
    $region48: #{rnn_model_forward.1} parent=5 // pred_fallthru
      _
    %p808 = scmp.le.s32.totalorder 2, %s13
    // Predicated region
    $region73: #{rnn_model_forward.1} parent=5 // pred_check
      %p809 = pneg %p808
    $region74: #{rnn_model_forward.1} parent=5 // pred_check_branch
      %811 = sbr.rel (%p809) target = $region76
    $region75: #{rnn_model_forward.1} parent=5 // pred_region
      %s812 = ssub.s32 %s13, 2
    $region76: #{rnn_model_forward.1} parent=5 // pred_fallthru
      _
  $region6: #{rnn_model_forward.1} parent=0 // loop_footer
    %s17 = sadd.s32 1, %s13
  $region7: #{rnn_model_forward.1} parent=0 // loop_footer_branch
    %12 = sbr.rel target = $region3
  $region8: #{rnn_model_forward.1} parent=0 // loop_exit
    _

</llo_original>
